<compile_context>
chip_gen: v7x
topology: tpu7x:2x2x1
jax: 0.10.0
libtpu: 0.0.40
codegen_flags: <defaults>
</compile_context>

<pallas_src>
import jax
import jax.numpy as jnp
import numpy as np
from jax.experimental import pallas as pl
from jax.experimental.pallas import tpu as pltpu

K = 4  # kernel size
S = 2  # stride
P = 1  # padding


def upsample_kernel(m_ref, p_ref, b_ref, x_ref, o_ref):
    # m_ref: VMEM (2, 2, C*W, C*2W)  conv weights fused with column select/interleave
    # p_ref: VMEM (2, 2, 2H, H)      0/1 row select + row-parity interleave matrices
    # b_ref: VMEM (1, C*2W)          bias, replicated over each channel's 2W lane slot
    # x_ref: VMEM (1, C, H, W)       one batch element, NCHW
    # o_ref: VMEM (1, C, 2H, 2W)     one batch element, final NCHW output
    C = x_ref.shape[1]
    H = x_ref.shape[2]
    W = x_ref.shape[3]
    W2 = 2 * W

    # Lay the C input planes side by side along lanes: Xfull[i, ci*W + j] = x[ci, i, j].
    xfull = jnp.concatenate(
        [x_ref[0, ci].astype(jnp.float32) for ci in range(C)], axis=1)  # (H, C*W)

    # Four independent (ph, dh) terms -> exposes ILP across MXU pushes.
    terms = []
    for ph in range(2):
        for dh in range(2):
            v = jnp.dot(xfull, m_ref[ph, dh],
                        preferred_element_type=jnp.float32)            # (H, C*2W)
            terms.append(jnp.dot(p_ref[ph, dh], v,
                                 preferred_element_type=jnp.float32))  # (2H, C*2W)
    acc = (terms[0] + terms[1]) + (terms[2] + terms[3]) + b_ref[...]

    # Slice each channel's 2W lane slot and store its final (2H, 2W) plane.
    for co in range(C):
        o_ref[0, co] = acc[:, co * W2:(co + 1) * W2].astype(o_ref.dtype)


def _phase_weights(weight_t):
    # w_phase[ph, pw, dh, dw, ci, co] = weight_t[ci, co, 3-2dh-ph, 3-2dw-pw]
    wt_hwio = jnp.transpose(weight_t, (2, 3, 0, 1))                    # (K, K, Cin, Cout)
    ks = 3 - (2 * jnp.arange(2)[None, :] + jnp.arange(2)[:, None])     # ks[p, d] = 3-2d-p
    return wt_hwio[ks[:, None, :, None], ks[None, :, None, :]].astype(jnp.float32)


def _build_operator_matrices(weight_t, bias, H, W):
    """Tiny constant matrices that fuse weights + zero border + NCHW interleave."""
    C = weight_t.shape[0]
    wp = _phase_weights(weight_t)                  # (ph, pw, dh, dw, ci, co)

    m_idx = jnp.arange(2 * W)
    pw_of_m = m_idx % 2                            # output column parity
    col_base = (m_idx + 1) // 2                    # j + pw for output column m = 2j+pw

    # sel[dw, j', m] = 1 iff input column j' == (j + pw) + dw - 1  (border -> no hit)
    jp = jnp.arange(W)
    sel = (jp[None, :, None] ==
           (col_base[None, None, :] + jnp.arange(2)[:, None, None] - 1)
           ).astype(jnp.float32)                   # (2, W, 2W)

    # wsel[ph, dh, dw, ci, co, m] = wp[ph, m%2, dh, dw, ci, co]
    wsel = jnp.transpose(wp, (0, 2, 3, 4, 5, 1))[..., pw_of_m]         # (2,2,2,C,C,2W)

    # m6[ph, dh, ci, j', co, m] = sum_dw sel[dw, j', m] * wsel[ph, dh, dw, ci, co, m]
    # (pure element-wise f32 ops -> exact, no matmul-precision concerns in the prep)
    m6 = (sel[None, None, :, None, :, None, :] *
          wsel[:, :, :, :, None, :, :]).sum(axis=2)                    # (2,2,C,W,C,2W)
    m_mat = m6.reshape(2, 2, C * W, C * 2 * W)

    # P[ph, dh, o, r] = 1 iff o%2 == ph and r == o//2 + ph + dh - 1  (border -> no hit)
    o_idx = jnp.arange(2 * H)[None, None, :, None]
    r_idx = jnp.arange(H)[None, None, None, :]
    ph_idx = jnp.arange(2)[:, None, None, None]
    dh_idx = jnp.arange(2)[None, :, None, None]
    p_mat = (((o_idx % 2) == ph_idx) &
             (r_idx == (o_idx // 2 + ph_idx + dh_idx - 1))).astype(jnp.float32)  # (2,2,2H,H)

    b_vec = jnp.repeat(bias.astype(jnp.float32), 2 * W)[None, :]       # (1, C*2W)
    return m_mat, p_mat, b_vec


@jax.jit
def upsample(x_nchw, weight_t, bias):
    """ConvTranspose2d(C, C, 4, 2, 1) forward.

    x_nchw:   (N, C, H, W)          PyTorch NCHW input
    weight_t: (C_in, C_out, 4, 4)   PyTorch ConvTranspose2d weight layout
    bias:     (C_out,)
    returns   (N, C, 2H, 2W)        NCHW output (written directly by the kernel)
    """
    N, C, H, W = x_nchw.shape
    Ho, Wo = S * H, S * W

    m_mat, p_mat, b_vec = _build_operator_matrices(weight_t, bias, H, W)

    itemsize = np.dtype(x_nchw.dtype).itemsize
    flops = N * (4 * 2 * H * (C * W) * (C * Wo) + 4 * 2 * Ho * H * (C * Wo))
    bytes_accessed = ((N * C * H * W + N * C * Ho * Wo) * itemsize
                      + (m_mat.size + p_mat.size + b_vec.size) * 4)

    return pl.pallas_call(
        upsample_kernel,
        out_shape=jax.ShapeDtypeStruct((N, C, Ho, Wo), x_nchw.dtype),
        grid_spec=pltpu.PrefetchScalarGridSpec(
            num_scalar_prefetch=0,
            grid=(N,),
            in_specs=[
                pl.BlockSpec((2, 2, C * W, C * Wo), lambda n: (0, 0, 0, 0)),
                pl.BlockSpec((2, 2, Ho, H), lambda n: (0, 0, 0, 0)),
                pl.BlockSpec((1, C * Wo), lambda n: (0, 0)),
                pl.BlockSpec((1, C, H, W), lambda n: (n, 0, 0, 0)),
            ],
            out_specs=pl.BlockSpec((1, C, Ho, Wo), lambda n: (n, 0, 0, 0)),
        ),
        compiler_params=pltpu.CompilerParams(
            dimension_semantics=("parallel",)),
        cost_estimate=pl.CostEstimate(flops=int(flops), transcendentals=0,
                                      bytes_accessed=int(bytes_accessed)),
    )(m_mat, p_mat, b_vec, x_nchw)


def ref_conv_transpose(x, wt, b):
    """Direct-definition NumPy reference for ConvTranspose2d(4,2,1)."""
    N, Cin, H, W = x.shape
    Cout = wt.shape[1]
    Ho, Wo = S * H, S * W
    y = np.zeros((N, Cout, Ho, Wo), np.float32)
    for n in range(N):
        for ic in range(Cin):
            for ih in range(H):
                for iw in range(W):
                    v = x[n, ic, ih, iw]
                    for kh in range(K):
                        oh = ih * S - P + kh
                        if oh < 0 or oh >= Ho:
                            continue
                        for kw in range(K):
                            ow = iw * S - P + kw
                            if ow < 0 or ow >= Wo:
                                continue
                            y[n, :, oh, ow] += v * wt[ic, :, kh, kw]
    y += b.reshape(1, Cout, 1, 1)
    return y


if __name__ == "__main__":
    key = jax.random.PRNGKey(0)
    kx, kwk, kb = jax.random.split(key, 3)

    N, C, H, W = 2, 4, 16, 16
    x = jax.random.normal(kx, (N, C, H, W), jnp.float32)

    # Deterministic param init mimicking PyTorch's uniform(-1/sqrt(fan_in), +)
    fan_in = C * K * K
    bound = 1.0 / (fan_in ** 0.5)
    weight = jax.random.uniform(kwk, (C, C, K, K), jnp.float32, -bound, bound)
    bias = jax.random.uniform(kb, (C,), jnp.float32, -bound, bound)

    y = upsample(x, weight, bias)
    y = jax.block_until_ready(y)
    assert y.shape == (N, C, 2 * H, 2 * W), y.shape

    y_ref = ref_conv_transpose(np.asarray(x), np.asarray(weight), np.asarray(bias))
    # Tolerance leaves headroom for the MXU's multi-pass f32 matmul rounding while
    # still catching any indexing/weight-regrouping bug (those show up at O(0.1)).
    np.testing.assert_allclose(np.asarray(y), y_ref, rtol=5e-3, atol=5e-3)

    print("KERNEL_OK")
</pallas_src>

<mosaic_0001>
module attributes {stable_mosaic.version = 11 : i64} {
  func.func @upsample_kernel(%arg0: i32, %arg1: memref<2x2x64x128xf32, #tpu.memory_space<vmem>>, %arg2: memref<2x2x32x16xf32, #tpu.memory_space<vmem>>, %arg3: memref<1x128xf32, #tpu.memory_space<vmem>>, %arg4: memref<1x4x16x16xf32, #tpu.memory_space<vmem>>, %arg5: memref<1x4x32x32xf32, #tpu.memory_space<vmem>>) attributes {dimension_semantics = [#tpu.dimension_semantics<parallel>], iteration_bounds = array<i64: 2>, scalar_prefetch = 0 : i64, scratch_operands = 0 : i64, tpu.core_type = #tpu.core_type<tc>, window_params = [{pipeline_mode = #tpu.pipeline_mode<synchronous>, transform_indices = @transform_0, window_bounds = array<i64: 2, 2, 64, 128>}, {pipeline_mode = #tpu.pipeline_mode<synchronous>, transform_indices = @transform_1, window_bounds = array<i64: 2, 2, 32, 16>}, {pipeline_mode = #tpu.pipeline_mode<synchronous>, transform_indices = @transform_2, window_bounds = array<i64: 1, 128>}, {transform_indices = @transform_3, window_bounds = array<i64: 1, 4, 16, 16>}, {transform_indices = @transform_4, window_bounds = array<i64: 1, 4, 32, 32>}]} {
    %c0 = arith.constant 0 : index
    %c0_0 = arith.constant 0 : index
    %c0_1 = arith.constant 0 : index
    %c0_2 = arith.constant 0 : index
    %0 = vector.load %arg4[%c0, %c0_0, %c0_1, %c0_2] : memref<1x4x16x16xf32, #tpu.memory_space<vmem>>, vector<1x1x16x16xf32>
    %1 = vector.shape_cast %0 : vector<1x1x16x16xf32> to vector<16x16xf32>
    %c0_3 = arith.constant 0 : index
    %c1 = arith.constant 1 : index
    %c0_4 = arith.constant 0 : index
    %c0_5 = arith.constant 0 : index
    %2 = vector.load %arg4[%c0_3, %c1, %c0_4, %c0_5] : memref<1x4x16x16xf32, #tpu.memory_space<vmem>>, vector<1x1x16x16xf32>
    %3 = vector.shape_cast %2 : vector<1x1x16x16xf32> to vector<16x16xf32>
    %c0_6 = arith.constant 0 : index
    %c2 = arith.constant 2 : index
    %c0_7 = arith.constant 0 : index
    %c0_8 = arith.constant 0 : index
    %4 = vector.load %arg4[%c0_6, %c2, %c0_7, %c0_8] : memref<1x4x16x16xf32, #tpu.memory_space<vmem>>, vector<1x1x16x16xf32>
    %5 = vector.shape_cast %4 : vector<1x1x16x16xf32> to vector<16x16xf32>
    %c0_9 = arith.constant 0 : index
    %c3 = arith.constant 3 : index
    %c0_10 = arith.constant 0 : index
    %c0_11 = arith.constant 0 : index
    %6 = vector.load %arg4[%c0_9, %c3, %c0_10, %c0_11] : memref<1x4x16x16xf32, #tpu.memory_space<vmem>>, vector<1x1x16x16xf32>
    %7 = vector.shape_cast %6 : vector<1x1x16x16xf32> to vector<16x16xf32>
    %8 = tpu.concatenate %1, %3, %5, %7 in 1 : vector<16x16xf32>, vector<16x16xf32>, vector<16x16xf32>, vector<16x16xf32> -> vector<16x64xf32>
    %c0_12 = arith.constant 0 : index
    %c0_13 = arith.constant 0 : index
    %c0_14 = arith.constant 0 : index
    %c0_15 = arith.constant 0 : index
    %9 = vector.load %arg1[%c0_12, %c0_13, %c0_14, %c0_15] : memref<2x2x64x128xf32, #tpu.memory_space<vmem>>, vector<1x1x64x128xf32>
    %10 = vector.shape_cast %9 : vector<1x1x64x128xf32> to vector<64x128xf32>
    %cst = arith.constant dense<0.000000e+00> : vector<16x128xf32>
    %11 = tpu.matmul %8, %10, %cst {dimension_numbers = #tpu.dot_dimension_numbers<[1], [0], [0], [1], [0, 0, 1, 1], [], []>} : vector<16x64xf32>, vector<64x128xf32>, vector<16x128xf32> -> vector<16x128xf32>
    %c0_16 = arith.constant 0 : index
    %c0_17 = arith.constant 0 : index
    %c0_18 = arith.constant 0 : index
    %c0_19 = arith.constant 0 : index
    %12 = vector.load %arg2[%c0_16, %c0_17, %c0_18, %c0_19] : memref<2x2x32x16xf32, #tpu.memory_space<vmem>>, vector<1x1x32x16xf32>
    %13 = vector.shape_cast %12 : vector<1x1x32x16xf32> to vector<32x16xf32>
    %cst_20 = arith.constant dense<0.000000e+00> : vector<32x128xf32>
    %14 = tpu.matmul %13, %11, %cst_20 {dimension_numbers = #tpu.dot_dimension_numbers<[1], [0], [0], [1], [0, 0, 1, 1], [], []>} : vector<32x16xf32>, vector<16x128xf32>, vector<32x128xf32> -> vector<32x128xf32>
    %c0_21 = arith.constant 0 : index
    %c1_22 = arith.constant 1 : index
    %c0_23 = arith.constant 0 : index
    %c0_24 = arith.constant 0 : index
    %15 = vector.load %arg1[%c0_21, %c1_22, %c0_23, %c0_24] : memref<2x2x64x128xf32, #tpu.memory_space<vmem>>, vector<1x1x64x128xf32>
    %16 = vector.shape_cast %15 : vector<1x1x64x128xf32> to vector<64x128xf32>
    %cst_25 = arith.constant dense<0.000000e+00> : vector<16x128xf32>
    %17 = tpu.matmul %8, %16, %cst_25 {dimension_numbers = #tpu.dot_dimension_numbers<[1], [0], [0], [1], [0, 0, 1, 1], [], []>} : vector<16x64xf32>, vector<64x128xf32>, vector<16x128xf32> -> vector<16x128xf32>
    %c0_26 = arith.constant 0 : index
    %c1_27 = arith.constant 1 : index
    %c0_28 = arith.constant 0 : index
    %c0_29 = arith.constant 0 : index
    %18 = vector.load %arg2[%c0_26, %c1_27, %c0_28, %c0_29] : memref<2x2x32x16xf32, #tpu.memory_space<vmem>>, vector<1x1x32x16xf32>
    %19 = vector.shape_cast %18 : vector<1x1x32x16xf32> to vector<32x16xf32>
    %cst_30 = arith.constant dense<0.000000e+00> : vector<32x128xf32>
    %20 = tpu.matmul %19, %17, %cst_30 {dimension_numbers = #tpu.dot_dimension_numbers<[1], [0], [0], [1], [0, 0, 1, 1], [], []>} : vector<32x16xf32>, vector<16x128xf32>, vector<32x128xf32> -> vector<32x128xf32>
    %c1_31 = arith.constant 1 : index
    %c0_32 = arith.constant 0 : index
    %c0_33 = arith.constant 0 : index
    %c0_34 = arith.constant 0 : index
    %21 = vector.load %arg1[%c1_31, %c0_32, %c0_33, %c0_34] : memref<2x2x64x128xf32, #tpu.memory_space<vmem>>, vector<1x1x64x128xf32>
    %22 = vector.shape_cast %21 : vector<1x1x64x128xf32> to vector<64x128xf32>
    %cst_35 = arith.constant dense<0.000000e+00> : vector<16x128xf32>
    %23 = tpu.matmul %8, %22, %cst_35 {dimension_numbers = #tpu.dot_dimension_numbers<[1], [0], [0], [1], [0, 0, 1, 1], [], []>} : vector<16x64xf32>, vector<64x128xf32>, vector<16x128xf32> -> vector<16x128xf32>
    %c1_36 = arith.constant 1 : index
    %c0_37 = arith.constant 0 : index
    %c0_38 = arith.constant 0 : index
    %c0_39 = arith.constant 0 : index
    %24 = vector.load %arg2[%c1_36, %c0_37, %c0_38, %c0_39] : memref<2x2x32x16xf32, #tpu.memory_space<vmem>>, vector<1x1x32x16xf32>
    %25 = vector.shape_cast %24 : vector<1x1x32x16xf32> to vector<32x16xf32>
    %cst_40 = arith.constant dense<0.000000e+00> : vector<32x128xf32>
    %26 = tpu.matmul %25, %23, %cst_40 {dimension_numbers = #tpu.dot_dimension_numbers<[1], [0], [0], [1], [0, 0, 1, 1], [], []>} : vector<32x16xf32>, vector<16x128xf32>, vector<32x128xf32> -> vector<32x128xf32>
    %c1_41 = arith.constant 1 : index
    %c1_42 = arith.constant 1 : index
    %c0_43 = arith.constant 0 : index
    %c0_44 = arith.constant 0 : index
    %27 = vector.load %arg1[%c1_41, %c1_42, %c0_43, %c0_44] : memref<2x2x64x128xf32, #tpu.memory_space<vmem>>, vector<1x1x64x128xf32>
    %28 = vector.shape_cast %27 : vector<1x1x64x128xf32> to vector<64x128xf32>
    %cst_45 = arith.constant dense<0.000000e+00> : vector<16x128xf32>
    %29 = tpu.matmul %8, %28, %cst_45 {dimension_numbers = #tpu.dot_dimension_numbers<[1], [0], [0], [1], [0, 0, 1, 1], [], []>} : vector<16x64xf32>, vector<64x128xf32>, vector<16x128xf32> -> vector<16x128xf32>
    %c1_46 = arith.constant 1 : index
    %c1_47 = arith.constant 1 : index
    %c0_48 = arith.constant 0 : index
    %c0_49 = arith.constant 0 : index
    %30 = vector.load %arg2[%c1_46, %c1_47, %c0_48, %c0_49] : memref<2x2x32x16xf32, #tpu.memory_space<vmem>>, vector<1x1x32x16xf32>
    %31 = vector.shape_cast %30 : vector<1x1x32x16xf32> to vector<32x16xf32>
    %cst_50 = arith.constant dense<0.000000e+00> : vector<32x128xf32>
    %32 = tpu.matmul %31, %29, %cst_50 {dimension_numbers = #tpu.dot_dimension_numbers<[1], [0], [0], [1], [0, 0, 1, 1], [], []>} : vector<32x16xf32>, vector<16x128xf32>, vector<32x128xf32> -> vector<32x128xf32>
    %33 = arith.addf %14, %20 : vector<32x128xf32>
    %34 = arith.addf %26, %32 : vector<32x128xf32>
    %35 = arith.addf %33, %34 : vector<32x128xf32>
    %c0_51 = arith.constant 0 : index
    %c0_52 = arith.constant 0 : index
    %36 = vector.load %arg3[%c0_51, %c0_52] : memref<1x128xf32, #tpu.memory_space<vmem>>, vector<1x128xf32>
    %37 = vector.broadcast %36 : vector<1x128xf32> to vector<32x128xf32>
    %38 = arith.addf %35, %37 : vector<32x128xf32>
    %39 = vector.extract_strided_slice %38 {offsets = [0, 0], sizes = [32, 32], strides = [1, 1]} : vector<32x128xf32> to vector<32x32xf32>
    %c0_53 = arith.constant 0 : index
    %c0_54 = arith.constant 0 : index
    %c0_55 = arith.constant 0 : index
    %c0_56 = arith.constant 0 : index
    %40 = vector.load %arg5[%c0_53, %c0_54, %c0_55, %c0_56] : memref<1x4x32x32xf32, #tpu.memory_space<vmem>>, vector<1x1x32x32xf32>
    %41 = vector.shape_cast %40 : vector<1x1x32x32xf32> to vector<32x32xf32>
    %42 = vector.shape_cast %39 : vector<32x32xf32> to vector<1x1x32x32xf32>
    tpu.vector_store %arg5[%c0_53, %c0_54, %c0_55, %c0_56], %42 {strides = array<i32>} : memref<1x4x32x32xf32, #tpu.memory_space<vmem>>, vector<1x1x32x32xf32>,
    %43 = vector.extract_strided_slice %38 {offsets = [0, 32], sizes = [32, 32], strides = [1, 1]} : vector<32x128xf32> to vector<32x32xf32>
    %c0_57 = arith.constant 0 : index
    %c1_58 = arith.constant 1 : index
    %c0_59 = arith.constant 0 : index
    %c0_60 = arith.constant 0 : index
    %44 = vector.load %arg5[%c0_57, %c1_58, %c0_59, %c0_60] : memref<1x4x32x32xf32, #tpu.memory_space<vmem>>, vector<1x1x32x32xf32>
    %45 = vector.shape_cast %44 : vector<1x1x32x32xf32> to vector<32x32xf32>
    %46 = vector.shape_cast %43 : vector<32x32xf32> to vector<1x1x32x32xf32>
    tpu.vector_store %arg5[%c0_57, %c1_58, %c0_59, %c0_60], %46 {strides = array<i32>} : memref<1x4x32x32xf32, #tpu.memory_space<vmem>>, vector<1x1x32x32xf32>,
    %47 = vector.extract_strided_slice %38 {offsets = [0, 64], sizes = [32, 32], strides = [1, 1]} : vector<32x128xf32> to vector<32x32xf32>
    %c0_61 = arith.constant 0 : index
    %c2_62 = arith.constant 2 : index
    %c0_63 = arith.constant 0 : index
    %c0_64 = arith.constant 0 : index
    %48 = vector.load %arg5[%c0_61, %c2_62, %c0_63, %c0_64] : memref<1x4x32x32xf32, #tpu.memory_space<vmem>>, vector<1x1x32x32xf32>
    %49 = vector.shape_cast %48 : vector<1x1x32x32xf32> to vector<32x32xf32>
    %50 = vector.shape_cast %47 : vector<32x32xf32> to vector<1x1x32x32xf32>
    tpu.vector_store %arg5[%c0_61, %c2_62, %c0_63, %c0_64], %50 {strides = array<i32>} : memref<1x4x32x32xf32, #tpu.memory_space<vmem>>, vector<1x1x32x32xf32>,
    %51 = vector.extract_strided_slice %38 {offsets = [0, 96], sizes = [32, 32], strides = [1, 1]} : vector<32x128xf32> to vector<32x32xf32>
    %c0_65 = arith.constant 0 : index
    %c3_66 = arith.constant 3 : index
    %c0_67 = arith.constant 0 : index
    %c0_68 = arith.constant 0 : index
    %52 = vector.load %arg5[%c0_65, %c3_66, %c0_67, %c0_68] : memref<1x4x32x32xf32, #tpu.memory_space<vmem>>, vector<1x1x32x32xf32>
    %53 = vector.shape_cast %52 : vector<1x1x32x32xf32> to vector<32x32xf32>
    %54 = vector.shape_cast %51 : vector<32x32xf32> to vector<1x1x32x32xf32>
    tpu.vector_store %arg5[%c0_65, %c3_66, %c0_67, %c0_68], %54 {strides = array<i32>} : memref<1x4x32x32xf32, #tpu.memory_space<vmem>>, vector<1x1x32x32xf32>,
    return
  }
  func.func @transform_0(%arg0: i32) -> (i32, i32, i32, i32) {
    %c0_i32 = arith.constant 0 : i32
    %c0_i32_0 = arith.constant 0 : i32
    %c0_i32_1 = arith.constant 0 : i32
    %c0_i32_2 = arith.constant 0 : i32
    %c0_i32_3 = arith.constant 0 : i32
    return %c0_i32, %c0_i32_0, %c0_i32_1, %c0_i32_2 : i32, i32, i32, i32
  }
  func.func @transform_1(%arg0: i32) -> (i32, i32, i32, i32) {
    %c0_i32 = arith.constant 0 : i32
    %c0_i32_0 = arith.constant 0 : i32
    %c0_i32_1 = arith.constant 0 : i32
    %c0_i32_2 = arith.constant 0 : i32
    %c0_i32_3 = arith.constant 0 : i32
    return %c0_i32, %c0_i32_0, %c0_i32_1, %c0_i32_2 : i32, i32, i32, i32
  }
  func.func @transform_2(%arg0: i32) -> (i32, i32) {
    %c0_i32 = arith.constant 0 : i32
    %c0_i32_0 = arith.constant 0 : i32
    %c0_i32_1 = arith.constant 0 : i32
    return %c0_i32, %c0_i32_0 : i32, i32
  }
  func.func @transform_3(%arg0: i32) -> (i32, i32, i32, i32) {
    %c0_i32 = arith.constant 0 : i32
    %c0_i32_0 = arith.constant 0 : i32
    %c0_i32_1 = arith.constant 0 : i32
    %c0_i32_2 = arith.constant 0 : i32
    return %arg0, %c0_i32, %c0_i32_0, %c0_i32_1 : i32, i32, i32, i32
  }
  func.func @transform_4(%arg0: i32) -> (i32, i32, i32, i32) {
    %c0_i32 = arith.constant 0 : i32
    %c0_i32_0 = arith.constant 0 : i32
    %c0_i32_1 = arith.constant 0 : i32
    %c0_i32_2 = arith.constant 0 : i32
    return %arg0, %c0_i32, %c0_i32_0, %c0_i32_1 : i32, i32, i32, i32
  }
}

</mosaic_0001>

<llo_original>
// kernel: upsample.1
$region0: #{upsample.1}
  #allocation0 [shape = 'u32[]', space=smem, size = 0x4, offset = 0x4, fixed_abs, tag = 'smem constant byte address 0x4 - core index']
  #allocation1 [shape = 'u32[144,128]{1,0:T(1,128)}', space=vmem, size = 0x12000, scoped, tag = 'internal scratch']
  %s0 = inlined_call_operand.vmem [shape: f32[2,2,64,128], index: 0, kind: input, shape index: {}]
  %s1 = inlined_call_operand.vmem [shape: f32[2,2,32,16], index: 1, kind: input, shape index: {}]
  %s2 = inlined_call_operand.vmem [shape: f32[1,128], index: 2, kind: input, shape index: {}]
  %s3 = inlined_call_operand.vmem [shape: f32[2,4,16,16], index: 3, kind: input, shape index: {}]
  %s4 = inlined_call_operand.hbm [shape: f32[2,4,32,32], index: 4, kind: output, shape index: {}]
  %s5 = sld [smem:[#allocation0]]
  $region49: #{upsample.1} parent=0
    _
  %s7 = ssub.s32 1, %s5
  %s8 = scalar_select 0, %s7, %s5
  $region1: #{upsample.1} parent=0
    #allocation2 [shape = 'u8[131072]{0}', space=vmem, size = 0x20000, scoped, tag = 'output window, operand 0']
    #allocation3 [shape = 's32[2]{0}', space=sflag, size = 0x8, scoped, tag = 'scoped memory for upsample.1']
    %9 = vsyncpa [#allocation3], 0
    %s10 = scalar_lea.sflag [#allocation3], 1
    %11 = vsyncpa %s10, 0
    loop: start=0, step=1, limit=4
    $region2: #{upsample.1} parent=1 // loop_pre_header
      _
    $region3: #{upsample.1} parent=1 // loop_header
      %s13 = sphi 0, %s17
      %p14 = scmp.ge.s32.totalorder %s13, 4
      %s21 = sphi 0, %s21
      %s23 = sphi 0, %s21
      %s24 = sphi 0, %s23
      %s38 = sphi 0, %s24
      %s42 = sphi 0, %s42
      %s44 = sphi 0, %s42
      %s45 = sphi 0, %s44
      %s59 = sphi 0, %s45
      %s63 = sphi 0, %s63
      %s65 = sphi 0, %s63
      %s66 = sphi 0, %s65
      %s80 = sphi 0, %s66
      %s86 = sphi 0, %s88
      %s89 = sphi 0, %s86
      %s90 = sphi 0, %s89
      %s106 = sphi 0, %s90
      %s112 = sphi 0, %s114
      %s115 = sphi 0, %s112
      %s116 = sphi 0, %s115
      %s132 = sphi 0, %s116
    $region4: #{upsample.1} parent=1 // loop_header_branch
      %16 = sbr.rel (%p14) target = $region8
    $region5: #{upsample.1} parent=1 // loop_body
      %s18 = ssub.s32 %s13, 1
      %s19 = ssub.s32 %s13, 2
      %s20 = sadd.s32 %s13, 1
      %s22 = sadd.s32 %s21, 1
      %p25 = scmp.eq.s32.totalorder %s13, 1
      %p26 = scmp.ne.s32.totalorder %s21, %s23
      %p27 = scmp.eq.s32.totalorder %s13, 0
      %p28 = por %p26, %p27
      %p29 = scmp.ne.s32.totalorder %s21, %s23
      %p30 = scmp.eq.s32.totalorder %s18, 1
      %p31 = por %p29, %p30
      %p32 = scmp.ne.s32.totalorder %s23, %s24
      %p33 = scmp.eq.s32.totalorder %s18, 0
      %p34 = por %p32, %p33
      %p35 = scmp.ne.s32.totalorder %s23, %s24
      %p36 = scmp.eq.s32.totalorder %s19, 1
      %p37 = por %p35, %p36
      %p39 = scmp.ne.s32.totalorder %s24, %s38
      %p40 = scmp.eq.s32.totalorder %s19, 0
      %p41 = por %p39, %p40
      %s43 = sadd.s32 %s42, 1
      %p46 = scmp.eq.s32.totalorder %s13, 1
      %p47 = scmp.ne.s32.totalorder %s42, %s44
      %p48 = scmp.eq.s32.totalorder %s13, 0
      %p49 = por %p47, %p48
      %p50 = scmp.ne.s32.totalorder %s42, %s44
      %p51 = scmp.eq.s32.totalorder %s18, 1
      %p52 = por %p50, %p51
      %p53 = scmp.ne.s32.totalorder %s44, %s45
      %p54 = scmp.eq.s32.totalorder %s18, 0
      %p55 = por %p53, %p54
      %p56 = scmp.ne.s32.totalorder %s44, %s45
      %p57 = scmp.eq.s32.totalorder %s19, 1
      %p58 = por %p56, %p57
      %p60 = scmp.ne.s32.totalorder %s45, %s59
      %p61 = scmp.eq.s32.totalorder %s19, 0
      %p62 = por %p60, %p61
      %s64 = sadd.s32 %s63, 1
      %p67 = scmp.eq.s32.totalorder %s13, 1
      %p68 = scmp.ne.s32.totalorder %s63, %s65
      %p69 = scmp.eq.s32.totalorder %s13, 0
      %p70 = por %p68, %p69
      %p71 = scmp.ne.s32.totalorder %s63, %s65
      %p72 = scmp.eq.s32.totalorder %s18, 1
      %p73 = por %p71, %p72
      %p74 = scmp.ne.s32.totalorder %s65, %s66
      %p75 = scmp.eq.s32.totalorder %s18, 0
      %p76 = por %p74, %p75
      %p77 = scmp.ne.s32.totalorder %s65, %s66
      %p78 = scmp.eq.s32.totalorder %s19, 1
      %p79 = por %p77, %p78
      %p81 = scmp.ne.s32.totalorder %s66, %s80
      %p82 = scmp.eq.s32.totalorder %s19, 0
      %p83 = por %p81, %p82
      %s84 = ssub.s32 %s13, %s20
      %p85 = scmp.eq.s32.totalorder %s84, 0
      %s87 = sadd.s32 %s86, 1
      %s88 = scalar_select %p85, %s86, %s87
      %p91 = pneg %p85
      %p92 = scmp.eq.s32.totalorder %s13, 1
      %p93 = por %p91, %p92
      %p94 = scmp.ne.s32.totalorder %s86, %s89
      %p95 = scmp.eq.s32.totalorder %s13, 0
      %p96 = por %p94, %p95
      %p97 = scmp.ne.s32.totalorder %s86, %s89
      %p98 = scmp.eq.s32.totalorder %s18, 1
      %p99 = por %p97, %p98
      %p100 = scmp.ne.s32.totalorder %s89, %s90
      %p101 = scmp.eq.s32.totalorder %s18, 0
      %p102 = por %p100, %p101
      %p103 = scmp.ne.s32.totalorder %s89, %s90
      %p104 = scmp.eq.s32.totalorder %s19, 1
      %p105 = por %p103, %p104
      %p107 = scmp.ne.s32.totalorder %s90, %s106
      %p108 = scmp.eq.s32.totalorder %s19, 0
      %p109 = por %p107, %p108
      %s110 = ssub.s32 %s13, %s20
      %p111 = scmp.eq.s32.totalorder %s110, 0
      %s113 = sadd.s32 %s112, 1
      %s114 = scalar_select %p111, %s112, %s113
      %p117 = pneg %p111
      %p118 = scmp.eq.s32.totalorder %s13, 1
      %p119 = por %p117, %p118
      %p120 = scmp.ne.s32.totalorder %s112, %s115
      %p121 = scmp.eq.s32.totalorder %s13, 0
      %p122 = por %p120, %p121
      %p123 = scmp.ne.s32.totalorder %s112, %s115
      %p124 = scmp.eq.s32.totalorder %s18, 1
      %p125 = por %p123, %p124
      %p126 = scmp.ne.s32.totalorder %s115, %s116
      %p127 = scmp.eq.s32.totalorder %s18, 0
      %p128 = por %p126, %p127
      %p129 = scmp.ne.s32.totalorder %s115, %s116
      %p130 = scmp.eq.s32.totalorder %s19, 1
      %p131 = por %p129, %p130
      %p133 = scmp.ne.s32.totalorder %s116, %s132
      %p134 = scmp.eq.s32.totalorder %s19, 0
      %p135 = por %p133, %p134
      %p136 = scmp.le.s32.totalorder 1, %s13
      %p137 = scmp.lt.s32.totalorder %s13, 3
      %p138 = pnand %p136, %p137
      %p139 = pneg %p138
      // Predicated region
      $region9: #{upsample.1} parent=5 // pred_check
        _
      $region10: #{upsample.1} parent=5 // pred_check_branch
        %141 = sbr.rel (%p138) target = $region12
      $region11: #{upsample.1} parent=5 // pred_region
        %s142 = ssub.s32 %s13, 1
        // Predicated region
        $region13: #{upsample.1} parent=11 // pred_check
          %p143 = pneg %p34
        $region14: #{upsample.1} parent=11 // pred_check_branch
          %145 = sbr.rel (%p143) target = $region16
        $region15: #{upsample.1} parent=11 // pred_region
          _
        $region16: #{upsample.1} parent=11 // pred_fallthru
          _
        // Predicated region
        $region17: #{upsample.1} parent=11 // pred_check
          %p146 = pneg %p55
        $region18: #{upsample.1} parent=11 // pred_check_branch
          %148 = sbr.rel (%p146) target = $region20
        $region19: #{upsample.1} parent=11 // pred_region
          _
        $region20: #{upsample.1} parent=11 // pred_fallthru
          _
        // Predicated region
        $region21: #{upsample.1} parent=11 // pred_check
          %p149 = pneg %p76
        $region22: #{upsample.1} parent=11 // pred_check_branch
          %151 = sbr.rel (%p149) target = $region24
        $region23: #{upsample.1} parent=11 // pred_region
          _
        $region24: #{upsample.1} parent=11 // pred_fallthru
          _
      $region12: #{upsample.1} parent=5 // pred_fallthru
        _
      %p152 = scmp.lt.s32.totalorder %s13, 2
      // Predicated region
      $region25: #{upsample.1} parent=5 // pred_check
        %p153 = pneg %p152
      $region26: #{upsample.1} parent=5 // pred_check_branch
        %155 = sbr.rel (%p153) target = $region28
      $region27: #{upsample.1} parent=5 // pred_region
        // Predicated region
        $region29: #{upsample.1} parent=27 // pred_check
          %p156 = pneg %p96
        $region30: #{upsample.1} parent=27 // pred_check_branch
          %158 = sbr.rel (%p156) target = $region32
        $region31: #{upsample.1} parent=27 // pred_region
          %p159 = scmp.lt.s32.totalorder %s13, 1
          %s160 = scalar_select %p159, %s13, 1
          %s161 = smul.addr %s160, 8
          %s162 = smul.addr %s161, 8
          %s163 = scalar_lea.vmem %s3, %s162
        $region32: #{upsample.1} parent=27 // pred_fallthru
          _
      $region28: #{upsample.1} parent=5 // pred_fallthru
        _
      %p164 = scmp.le.s32.totalorder 1, %s13
      %p165 = scmp.lt.s32.totalorder %s13, 3
      %p166 = pnand %p164, %p165
      %p167 = pneg %p166
      // Predicated region
      $region33: #{upsample.1} parent=5 // pred_check
        _
      $region34: #{upsample.1} parent=5 // pred_check_branch
        %169 = sbr.rel (%p166) target = $region36
      $region35: #{upsample.1} parent=5 // pred_region
        %s170 = ssub.s32 %s13, 1
        %p171 = pneg %p34
        %p172 = pneg %p31
        %p173 = pneg %p55
        %p174 = pneg %p52
        %p175 = pneg %p76
        %p176 = pneg %p73
        %p177 = scmp.lt.s32.totalorder %s18, 1
        %s178 = scalar_select %p177, %s18, 1
        %s179 = smul.addr %s178, 8
        %s180 = smul.addr %s179, 8
        %s181 = scalar_lea.vmem %s3, %s180
        %p182 = pneg %p102
        %p183 = pneg %p99
        %p184 = pneg %p128
        %p185 = pneg %p125
        %s186 = sand.u32 %s115, 1
        %s187 = scalar_lea.sflag [#allocation3], %s186
        %s188 = sand.u32 %s115, 1
        %s189 = smul.addr %s188, 128
        %s190 = scalar_lea.vmem [#allocation2], %s189
        %p191 = scmp.lt.s32.totalorder %s18, 1
        %s192 = scalar_select %p191, %s18, 1
        %s193 = smul.addr %s192, 8
        %s194 = smul.addr %s193, 8
        %s195 = scalar_lea.vmem %s3, %s194
        %v196 = vld [vmem:[%s195] sm:$0xff]
        %v197 = vld [vmem:[%s195 + $0x8] sm:$0xff]
        %s198 = scalar_lea.vmem %s195, 16
        %v199 = vld [vmem:[%s198] sm:$0xff]
        %v200 = vld [vmem:[%s198 + $0x8] sm:$0xff]
        %s201 = scalar_lea.vmem %s195, 32
        %v202 = vld [vmem:[%s201] sm:$0xff]
        %v203 = vld [vmem:[%s201 + $0x8] sm:$0xff]
        %s204 = scalar_lea.vmem %s195, 48
        %v205 = vld [vmem:[%s204] sm:$0xff]
        %v206 = vld [vmem:[%s204 + $0x8] sm:$0xff]
        %209 = vrot.lane.b32.xlu0 %v199, 16
        %v210 = vpop.permute.xlu0 %209
        %211 = vrot.lane.b32.xlu0 %v200, 16
        %v212 = vpop.permute.xlu0 %211
        %217 = vrot.lane.b32.xlu0 %v202, 32
        %v218 = vpop.permute.xlu0 %217
        %219 = vrot.lane.b32.xlu0 %v203, 32
        %v220 = vpop.permute.xlu0 %219
        %225 = vrot.lane.b32.xlu0 %v205, 48
        %v226 = vpop.permute.xlu0 %225
        %227 = vrot.lane.b32.xlu0 %v206, 48
        %v228 = vpop.permute.xlu0 %227
        %vm231 = vcmask 130048
        %v232 = vsel %vm231, %v196, %v210
        %v233 = vsel %vm231, %v197, %v212
        %vm234 = vcmask 261120
        %v235 = vsel %vm234, %v232, %v218
        %v236 = vsel %vm234, %v233, %v220
        %vm237 = vcmask 392192
        %v238 = vsel %vm237, %v235, %v226
        %v239 = vsel %vm237, %v236, %v228
        %v240 = vld [vmem:[%s0] sm:$0xff]
        %v241 = vld [vmem:[%s0 + $0x8] sm:$0xff]
        %v242 = vld [vmem:[%s0 + $0x10] sm:$0xff]
        %v243 = vld [vmem:[%s0 + $0x18] sm:$0xff]
        %v244 = vld [vmem:[%s0 + $0x20] sm:$0xff]
        %v245 = vld [vmem:[%s0 + $0x28] sm:$0xff]
        %v246 = vld [vmem:[%s0 + $0x30] sm:$0xff]
        %v247 = vld [vmem:[%s0 + $0x38] sm:$0xff]
        %vm248 = vcmask 523264
        %v250 = vsel %vm248, %v238, 0
        %v253 = vsel %vm248, %v239, 0
        %255 = vmatprep.subr.mxu0 0.0
        %256 = vmatpush1.msra.mxu0 %v240
        %257 = vmatprep.subr.mxu0 0.0
        %258 = vmatpush1.msra.mxu0 %v241
        %259 = vmatprep.subr.mxu0 0.0
        %260 = vmatpush1.msra.mxu0 %v242
        %261 = vmatprep.subr.mxu0 0.0
        %262 = vmatpush1.msra.mxu0 %v243
        %263 = vmatprep.subr.mxu0 0.0
        %264 = vmatpush1.msra.mxu0 %v244
        %265 = vmatprep.subr.mxu0 0.0
        %266 = vmatpush1.msra.mxu0 %v245
        %267 = vmatprep.subr.mxu0 0.0
        %268 = vmatpush1.msra.mxu0 %v246
        %269 = vmatprep.subr.mxu0 0.0
        %270 = vmatpush1.msra.mxu0 %v247
        %271 = vmatprep.subr.mxu0 0.0
        %272 = vmatpush1.msra.mxu0 0.0
        %273 = vmatprep.subr.mxu0 0.0
        %274 = vmatpush1.msra.mxu0 0.0
        %275 = vmatprep.subr.mxu0 0.0
        %276 = vmatpush1.msra.mxu0 0.0
        %277 = vmatprep.subr.mxu0 0.0
        %278 = vmatpush1.msra.mxu0 0.0
        %279 = vmatprep.subr.mxu0 0.0
        %280 = vmatpush1.msra.mxu0 0.0
        %281 = vmatprep.subr.mxu0 0.0
        %282 = vmatpush1.msra.mxu0 0.0
        %283 = vmatprep.subr.mxu0 0.0
        %284 = vmatpush1.msra.mxu0 0.0
        %285 = vmatprep.subr.mxu0 0.0
        %286 = vmatpush1.msra.mxu0 0.0
        %287 = vmatprep.subr.mxu0 0.0
        %288 = vmatpush1.msra.mxu0 0.0
        %289 = vmatprep.subr.mxu0 0.0
        %290 = vmatpush1.msra.mxu0 0.0
        %291 = vmatprep.subr.mxu0 0.0
        %292 = vmatpush1.msra.mxu0 0.0
        %293 = vmatprep.subr.mxu0 0.0
        %294 = vmatpush1.msra.mxu0 0.0
        %295 = vmatprep.subr.mxu0 0.0
        %296 = vmatpush1.msra.mxu0 0.0
        %297 = vmatprep.subr.mxu0 0.0
        %298 = vmatpush1.msra.mxu0 0.0
        %299 = vmatprep.subr.mxu0 0.0
        %300 = vmatpush1.msra.mxu0 0.0
        %301 = vmatprep.subr.mxu0 0.0
        %302 = vmatpush1.msra.mxu0 0.0
        %303 = vmatprep.subr.mxu0 0.0
        %304 = vmatpush1.msra.mxu0 0.0
        %305 = vmatprep.subr.mxu0 0.0
        %306 = vmatpush1.msra.mxu0 0.0
        %307 = vmatprep.subr.mxu0 0.0
        %308 = vmatpush1.msra.mxu0 0.0
        %309 = vmatprep.subr.mxu0 0.0
        %310 = vmatpush1.msra.mxu0 0.0
        %311 = vmatprep.subr.mxu0 0.0
        %312 = vmatpush1.msra.mxu0 0.0
        %313 = vmatprep.subr.mxu0 0.0
        %314 = vmatpush1.msra.mxu0 0.0
        %315 = vmatprep.subr.mxu0 0.0
        %316 = vmatpush1.msra.mxu0 0.0
        %317 = vmatprep.subr.mxu0 0.0
        %318 = vmatpush1.msra.mxu0 0.0
        %319 = vmatprep.mubr.f32.mxu0 0.0
        %320 = vmatmul.mubr.f32.gmra.mrb[0].mxu0 %v250
        %v321 = vpop.f32.mrb[0].mxu0
        %v322 = vadd.f32 0.0, %v321
        %v323 = vpop.f32.mrb[0].mxu0
        %324 = vmatprep.mubr.f32.mxu0 0.0
        %325 = vmatmul.mubr.f32.gmra.mrb[0].mxu0 %v253
        %v326 = vpop.f32.mrb[0].mxu0
        %v327 = vadd.f32 0.0, %v326
        %v328 = vpop.f32.mrb[0].mxu0
        %329 = vdwg.mxu0
        %v330 = vld [vmem:[%s1] sm:$0xff]
        %v331 = vld [vmem:[%s1 + $0x8] sm:$0xff]
        %v332 = vld [vmem:[%s1 + $0x10] sm:$0xff]
        %v333 = vld [vmem:[%s1 + $0x18] sm:$0xff]
        %s334 = scalar_lea.vmem %s0, 64
        %v335 = vld [vmem:[%s334] sm:$0xff]
        %v336 = vld [vmem:[%s334 + $0x8] sm:$0xff]
        %v337 = vld [vmem:[%s334 + $0x10] sm:$0xff]
        %v338 = vld [vmem:[%s334 + $0x18] sm:$0xff]
        %v339 = vld [vmem:[%s334 + $0x20] sm:$0xff]
        %v340 = vld [vmem:[%s334 + $0x28] sm:$0xff]
        %v341 = vld [vmem:[%s334 + $0x30] sm:$0xff]
        %v342 = vld [vmem:[%s334 + $0x38] sm:$0xff]
        %343 = vmatprep.subr.mxu0 0.0
        %344 = vmatpush1.msra.mxu0 %v335
        %345 = vmatprep.subr.mxu0 0.0
        %346 = vmatpush1.msra.mxu0 %v336
        %347 = vmatprep.subr.mxu0 0.0
        %348 = vmatpush1.msra.mxu0 %v337
        %349 = vmatprep.subr.mxu0 0.0
        %350 = vmatpush1.msra.mxu0 %v338
        %351 = vmatprep.subr.mxu0 0.0
        %352 = vmatpush1.msra.mxu0 %v339
        %353 = vmatprep.subr.mxu0 0.0
        %354 = vmatpush1.msra.mxu0 %v340
        %355 = vmatprep.subr.mxu0 0.0
        %356 = vmatpush1.msra.mxu0 %v341
        %357 = vmatprep.subr.mxu0 0.0
        %358 = vmatpush1.msra.mxu0 %v342
        %359 = vmatprep.subr.mxu0 0.0
        %360 = vmatpush1.msra.mxu0 0.0
        %361 = vmatprep.subr.mxu0 0.0
        %362 = vmatpush1.msra.mxu0 0.0
        %363 = vmatprep.subr.mxu0 0.0
        %364 = vmatpush1.msra.mxu0 0.0
        %365 = vmatprep.subr.mxu0 0.0
        %366 = vmatpush1.msra.mxu0 0.0
        %367 = vmatprep.subr.mxu0 0.0
        %368 = vmatpush1.msra.mxu0 0.0
        %369 = vmatprep.subr.mxu0 0.0
        %370 = vmatpush1.msra.mxu0 0.0
        %371 = vmatprep.subr.mxu0 0.0
        %372 = vmatpush1.msra.mxu0 0.0
        %373 = vmatprep.subr.mxu0 0.0
        %374 = vmatpush1.msra.mxu0 0.0
        %375 = vmatprep.subr.mxu0 0.0
        %376 = vmatpush1.msra.mxu0 0.0
        %377 = vmatprep.subr.mxu0 0.0
        %378 = vmatpush1.msra.mxu0 0.0
        %379 = vmatprep.subr.mxu0 0.0
        %380 = vmatpush1.msra.mxu0 0.0
        %381 = vmatprep.subr.mxu0 0.0
        %382 = vmatpush1.msra.mxu0 0.0
        %383 = vmatprep.subr.mxu0 0.0
        %384 = vmatpush1.msra.mxu0 0.0
        %385 = vmatprep.subr.mxu0 0.0
        %386 = vmatpush1.msra.mxu0 0.0
        %387 = vmatprep.subr.mxu0 0.0
        %388 = vmatpush1.msra.mxu0 0.0
        %389 = vmatprep.subr.mxu0 0.0
        %390 = vmatpush1.msra.mxu0 0.0
        %391 = vmatprep.subr.mxu0 0.0
        %392 = vmatpush1.msra.mxu0 0.0
        %393 = vmatprep.subr.mxu0 0.0
        %394 = vmatpush1.msra.mxu0 0.0
        %395 = vmatprep.subr.mxu0 0.0
        %396 = vmatpush1.msra.mxu0 0.0
        %397 = vmatprep.subr.mxu0 0.0
        %398 = vmatpush1.msra.mxu0 0.0
        %399 = vmatprep.subr.mxu0 0.0
        %400 = vmatpush1.msra.mxu0 0.0
        %401 = vmatprep.subr.mxu0 0.0
        %402 = vmatpush1.msra.mxu0 0.0
        %403 = vmatprep.subr.mxu0 0.0
        %404 = vmatpush1.msra.mxu0 0.0
        %405 = vmatprep.subr.mxu0 0.0
        %406 = vmatpush1.msra.mxu0 0.0
        %407 = vmatprep.mubr.f32.mxu0 0.0
        %408 = vmatmul.mubr.f32.gmra.mrb[0].mxu0 %v250
        %v409 = vpop.f32.mrb[0].mxu0
        %v410 = vadd.f32 0.0, %v409
        %v411 = vpop.f32.mrb[0].mxu0
        %412 = vmatprep.mubr.f32.mxu0 0.0
        %413 = vmatmul.mubr.f32.gmra.mrb[0].mxu0 %v253
        %v414 = vpop.f32.mrb[0].mxu0
        %v415 = vadd.f32 0.0, %v414
        %v416 = vpop.f32.mrb[0].mxu0
        %417 = vdwg.mxu0
        %s418 = scalar_lea.vmem %s1, 32
        %v419 = vld [vmem:[%s418] sm:$0xff]
        %v420 = vld [vmem:[%s418 + $0x8] sm:$0xff]
        %v421 = vld [vmem:[%s418 + $0x10] sm:$0xff]
        %v422 = vld [vmem:[%s418 + $0x18] sm:$0xff]
        %v424 = vsel %vm231, %v419, 0
        %v427 = vsel %vm231, %v420, 0
        %v430 = vsel %vm231, %v421, 0
        %v433 = vsel %vm231, %v422, 0
        %435 = vmatprep.subr.mxu0 0.0
        %436 = vmatpush1.msra.mxu0 %v410
        %437 = vmatprep.subr.mxu0 0.0
        %438 = vmatpush1.msra.mxu0 %v415
        %439 = vmatprep.subr.mxu0 0.0
        %440 = vmatpush1.msra.mxu0 0.0
        %441 = vmatprep.subr.mxu0 0.0
        %442 = vmatpush1.msra.mxu0 0.0
        %443 = vmatprep.subr.mxu0 0.0
        %444 = vmatpush1.msra.mxu0 0.0
        %445 = vmatprep.subr.mxu0 0.0
        %446 = vmatpush1.msra.mxu0 0.0
        %447 = vmatprep.subr.mxu0 0.0
        %448 = vmatpush1.msra.mxu0 0.0
        %449 = vmatprep.subr.mxu0 0.0
        %450 = vmatpush1.msra.mxu0 0.0
        %451 = vmatprep.subr.mxu0 0.0
        %452 = vmatpush1.msra.mxu0 0.0
        %453 = vmatprep.subr.mxu0 0.0
        %454 = vmatpush1.msra.mxu0 0.0
        %455 = vmatprep.subr.mxu0 0.0
        %456 = vmatpush1.msra.mxu0 0.0
        %457 = vmatprep.subr.mxu0 0.0
        %458 = vmatpush1.msra.mxu0 0.0
        %459 = vmatprep.subr.mxu0 0.0
        %460 = vmatpush1.msra.mxu0 0.0
        %461 = vmatprep.subr.mxu0 0.0
        %462 = vmatpush1.msra.mxu0 0.0
        %463 = vmatprep.subr.mxu0 0.0
        %464 = vmatpush1.msra.mxu0 0.0
        %465 = vmatprep.subr.mxu0 0.0
        %466 = vmatpush1.msra.mxu0 0.0
        %467 = vmatprep.subr.mxu0 0.0
        %468 = vmatpush1.msra.mxu0 0.0
        %469 = vmatprep.subr.mxu0 0.0
        %470 = vmatpush1.msra.mxu0 0.0
        %471 = vmatprep.subr.mxu0 0.0
        %472 = vmatpush1.msra.mxu0 0.0
        %473 = vmatprep.subr.mxu0 0.0
        %474 = vmatpush1.msra.mxu0 0.0
        %475 = vmatprep.subr.mxu0 0.0
        %476 = vmatpush1.msra.mxu0 0.0
        %477 = vmatprep.subr.mxu0 0.0
        %478 = vmatpush1.msra.mxu0 0.0
        %479 = vmatprep.subr.mxu0 0.0
        %480 = vmatpush1.msra.mxu0 0.0
        %481 = vmatprep.subr.mxu0 0.0
        %482 = vmatpush1.msra.mxu0 0.0
        %483 = vmatprep.subr.mxu0 0.0
        %484 = vmatpush1.msra.mxu0 0.0
        %485 = vmatprep.subr.mxu0 0.0
        %486 = vmatpush1.msra.mxu0 0.0
        %487 = vmatprep.subr.mxu0 0.0
        %488 = vmatpush1.msra.mxu0 0.0
        %489 = vmatprep.subr.mxu0 0.0
        %490 = vmatpush1.msra.mxu0 0.0
        %491 = vmatprep.subr.mxu0 0.0
        %492 = vmatpush1.msra.mxu0 0.0
        %493 = vmatprep.subr.mxu0 0.0
        %494 = vmatpush1.msra.mxu0 0.0
        %495 = vmatprep.subr.mxu0 0.0
        %496 = vmatpush1.msra.mxu0 0.0
        %497 = vmatprep.subr.mxu0 0.0
        %498 = vmatpush1.msra.mxu0 0.0
        %499 = vmatprep.mubr.f32.mxu0 0.0
        %500 = vmatmul.mubr.f32.gmra.mrb[0].mxu0 %v424
        %v501 = vpop.f32.mrb[0].mxu0
        %v502 = vadd.f32 0.0, %v501
        %v503 = vpop.f32.mrb[0].mxu0
        %504 = vmatprep.mubr.f32.mxu0 0.0
        %505 = vmatmul.mubr.f32.gmra.mrb[0].mxu0 %v427
        %v506 = vpop.f32.mrb[0].mxu0
        %v507 = vadd.f32 0.0, %v506
        %v508 = vpop.f32.mrb[0].mxu0
        %509 = vmatprep.mubr.f32.mxu0 0.0
        %510 = vmatmul.mubr.f32.gmra.mrb[0].mxu0 %v430
        %v511 = vpop.f32.mrb[0].mxu0
        %v512 = vadd.f32 0.0, %v511
        %v513 = vpop.f32.mrb[0].mxu0
        %514 = vmatprep.mubr.f32.mxu0 0.0
        %515 = vmatmul.mubr.f32.gmra.mrb[0].mxu0 %v433
        %v516 = vpop.f32.mrb[0].mxu0
        %v517 = vadd.f32 0.0, %v516
        %v518 = vpop.f32.mrb[0].mxu0
        %519 = vdwg.mxu0
        %s520 = scalar_lea.vmem %s0, 128
        %v521 = vld [vmem:[%s520] sm:$0xff]
        %v522 = vld [vmem:[%s520 + $0x8] sm:$0xff]
        %v523 = vld [vmem:[%s520 + $0x10] sm:$0xff]
        %v524 = vld [vmem:[%s520 + $0x18] sm:$0xff]
        %v525 = vld [vmem:[%s520 + $0x20] sm:$0xff]
        %v526 = vld [vmem:[%s520 + $0x28] sm:$0xff]
        %v527 = vld [vmem:[%s520 + $0x30] sm:$0xff]
        %v528 = vld [vmem:[%s520 + $0x38] sm:$0xff]
        %529 = vmatprep.subr.mxu0 0.0
        %530 = vmatpush1.msra.mxu0 %v521
        %531 = vmatprep.subr.mxu0 0.0
        %532 = vmatpush1.msra.mxu0 %v522
        %533 = vmatprep.subr.mxu0 0.0
        %534 = vmatpush1.msra.mxu0 %v523
        %535 = vmatprep.subr.mxu0 0.0
        %536 = vmatpush1.msra.mxu0 %v524
        %537 = vmatprep.subr.mxu0 0.0
        %538 = vmatpush1.msra.mxu0 %v525
        %539 = vmatprep.subr.mxu0 0.0
        %540 = vmatpush1.msra.mxu0 %v526
        %541 = vmatprep.subr.mxu0 0.0
        %542 = vmatpush1.msra.mxu0 %v527
        %543 = vmatprep.subr.mxu0 0.0
        %544 = vmatpush1.msra.mxu0 %v528
        %545 = vmatprep.subr.mxu0 0.0
        %546 = vmatpush1.msra.mxu0 0.0
        %547 = vmatprep.subr.mxu0 0.0
        %548 = vmatpush1.msra.mxu0 0.0
        %549 = vmatprep.subr.mxu0 0.0
        %550 = vmatpush1.msra.mxu0 0.0
        %551 = vmatprep.subr.mxu0 0.0
        %552 = vmatpush1.msra.mxu0 0.0
        %553 = vmatprep.subr.mxu0 0.0
        %554 = vmatpush1.msra.mxu0 0.0
        %555 = vmatprep.subr.mxu0 0.0
        %556 = vmatpush1.msra.mxu0 0.0
        %557 = vmatprep.subr.mxu0 0.0
        %558 = vmatpush1.msra.mxu0 0.0
        %559 = vmatprep.subr.mxu0 0.0
        %560 = vmatpush1.msra.mxu0 0.0
        %561 = vmatprep.subr.mxu0 0.0
        %562 = vmatpush1.msra.mxu0 0.0
        %563 = vmatprep.subr.mxu0 0.0
        %564 = vmatpush1.msra.mxu0 0.0
        %565 = vmatprep.subr.mxu0 0.0
        %566 = vmatpush1.msra.mxu0 0.0
        %567 = vmatprep.subr.mxu0 0.0
        %568 = vmatpush1.msra.mxu0 0.0
        %569 = vmatprep.subr.mxu0 0.0
        %570 = vmatpush1.msra.mxu0 0.0
        %571 = vmatprep.subr.mxu0 0.0
        %572 = vmatpush1.msra.mxu0 0.0
        %573 = vmatprep.subr.mxu0 0.0
        %574 = vmatpush1.msra.mxu0 0.0
        %575 = vmatprep.subr.mxu0 0.0
        %576 = vmatpush1.msra.mxu0 0.0
        %577 = vmatprep.subr.mxu0 0.0
        %578 = vmatpush1.msra.mxu0 0.0
        %579 = vmatprep.subr.mxu0 0.0
        %580 = vmatpush1.msra.mxu0 0.0
        %581 = vmatprep.subr.mxu0 0.0
        %582 = vmatpush1.msra.mxu0 0.0
        %583 = vmatprep.subr.mxu0 0.0
        %584 = vmatpush1.msra.mxu0 0.0
        %585 = vmatprep.subr.mxu0 0.0
        %586 = vmatpush1.msra.mxu0 0.0
        %587 = vmatprep.subr.mxu0 0.0
        %588 = vmatpush1.msra.mxu0 0.0
        %589 = vmatprep.subr.mxu0 0.0
        %590 = vmatpush1.msra.mxu0 0.0
        %591 = vmatprep.subr.mxu0 0.0
        %592 = vmatpush1.msra.mxu0 0.0
        %593 = vmatprep.mubr.f32.mxu0 0.0
        %594 = vmatmul.mubr.f32.gmra.mrb[0].mxu0 %v250
        %v595 = vpop.f32.mrb[0].mxu0
        %v596 = vadd.f32 0.0, %v595
        %v597 = vpop.f32.mrb[0].mxu0
        %598 = vmatprep.mubr.f32.mxu0 0.0
        %599 = vmatmul.mubr.f32.gmra.mrb[0].mxu0 %v253
        %v600 = vpop.f32.mrb[0].mxu0
        %v601 = vadd.f32 0.0, %v600
        %v602 = vpop.f32.mrb[0].mxu0
        %603 = vdwg.mxu0
        %s604 = scalar_lea.vmem %s1, 64
        %v605 = vld [vmem:[%s604] sm:$0xff]
        %v606 = vld [vmem:[%s604 + $0x8] sm:$0xff]
        %v607 = vld [vmem:[%s604 + $0x10] sm:$0xff]
        %v608 = vld [vmem:[%s604 + $0x18] sm:$0xff]
        %s609 = scalar_lea.vmem %s0, 192
        %v610 = vld [vmem:[%s609] sm:$0xff]
        %v611 = vld [vmem:[%s609 + $0x8] sm:$0xff]
        %v612 = vld [vmem:[%s609 + $0x10] sm:$0xff]
        %v613 = vld [vmem:[%s609 + $0x18] sm:$0xff]
        %v614 = vld [vmem:[%s609 + $0x20] sm:$0xff]
        %v615 = vld [vmem:[%s609 + $0x28] sm:$0xff]
        %v616 = vld [vmem:[%s609 + $0x30] sm:$0xff]
        %v617 = vld [vmem:[%s609 + $0x38] sm:$0xff]
        %618 = vmatprep.subr.mxu0 0.0
        %619 = vmatpush1.msra.mxu0 %v610
        %620 = vmatprep.subr.mxu0 0.0
        %621 = vmatpush1.msra.mxu0 %v611
        %622 = vmatprep.subr.mxu0 0.0
        %623 = vmatpush1.msra.mxu0 %v612
        %624 = vmatprep.subr.mxu0 0.0
        %625 = vmatpush1.msra.mxu0 %v613
        %626 = vmatprep.subr.mxu0 0.0
        %627 = vmatpush1.msra.mxu0 %v614
        %628 = vmatprep.subr.mxu0 0.0
        %629 = vmatpush1.msra.mxu0 %v615
        %630 = vmatprep.subr.mxu0 0.0
        %631 = vmatpush1.msra.mxu0 %v616
        %632 = vmatprep.subr.mxu0 0.0
        %633 = vmatpush1.msra.mxu0 %v617
        %634 = vmatprep.subr.mxu0 0.0
        %635 = vmatpush1.msra.mxu0 0.0
        %636 = vmatprep.subr.mxu0 0.0
        %637 = vmatpush1.msra.mxu0 0.0
        %638 = vmatprep.subr.mxu0 0.0
        %639 = vmatpush1.msra.mxu0 0.0
        %640 = vmatprep.subr.mxu0 0.0
        %641 = vmatpush1.msra.mxu0 0.0
        %642 = vmatprep.subr.mxu0 0.0
        %643 = vmatpush1.msra.mxu0 0.0
        %644 = vmatprep.subr.mxu0 0.0
        %645 = vmatpush1.msra.mxu0 0.0
        %646 = vmatprep.subr.mxu0 0.0
        %647 = vmatpush1.msra.mxu0 0.0
        %648 = vmatprep.subr.mxu0 0.0
        %649 = vmatpush1.msra.mxu0 0.0
        %650 = vmatprep.subr.mxu0 0.0
        %651 = vmatpush1.msra.mxu0 0.0
        %652 = vmatprep.subr.mxu0 0.0
        %653 = vmatpush1.msra.mxu0 0.0
        %654 = vmatprep.subr.mxu0 0.0
        %655 = vmatpush1.msra.mxu0 0.0
        %656 = vmatprep.subr.mxu0 0.0
        %657 = vmatpush1.msra.mxu0 0.0
        %658 = vmatprep.subr.mxu0 0.0
        %659 = vmatpush1.msra.mxu0 0.0
        %660 = vmatprep.subr.mxu0 0.0
        %661 = vmatpush1.msra.mxu0 0.0
        %662 = vmatprep.subr.mxu0 0.0
        %663 = vmatpush1.msra.mxu0 0.0
        %664 = vmatprep.subr.mxu0 0.0
        %665 = vmatpush1.msra.mxu0 0.0
        %666 = vmatprep.subr.mxu0 0.0
        %667 = vmatpush1.msra.mxu0 0.0
        %668 = vmatprep.subr.mxu0 0.0
        %669 = vmatpush1.msra.mxu0 0.0
        %670 = vmatprep.subr.mxu0 0.0
        %671 = vmatpush1.msra.mxu0 0.0
        %672 = vmatprep.subr.mxu0 0.0
        %673 = vmatpush1.msra.mxu0 0.0
        %674 = vmatprep.subr.mxu0 0.0
        %675 = vmatpush1.msra.mxu0 0.0
        %676 = vmatprep.subr.mxu0 0.0
        %677 = vmatpush1.msra.mxu0 0.0
        %678 = vmatprep.subr.mxu0 0.0
        %679 = vmatpush1.msra.mxu0 0.0
        %680 = vmatprep.subr.mxu0 0.0
        %681 = vmatpush1.msra.mxu0 0.0
        %682 = vmatprep.mubr.f32.mxu0 0.0
        %683 = vmatmul.mubr.f32.gmra.mrb[0].mxu0 %v250
        %v684 = vpop.f32.mrb[0].mxu0
        %v685 = vadd.f32 0.0, %v684
        %v686 = vpop.f32.mrb[0].mxu0
        %687 = vmatprep.mubr.f32.mxu0 0.0
        %688 = vmatmul.mubr.f32.gmra.mrb[0].mxu0 %v253
        %v689 = vpop.f32.mrb[0].mxu0
        %v690 = vadd.f32 0.0, %v689
        %v691 = vpop.f32.mrb[0].mxu0
        %692 = vdwg.mxu0
        %s693 = scalar_lea.vmem %s1, 96
        %v694 = vld [vmem:[%s693] sm:$0xff]
        %v695 = vld [vmem:[%s693 + $0x8] sm:$0xff]
        %v696 = vld [vmem:[%s693 + $0x10] sm:$0xff]
        %v697 = vld [vmem:[%s693 + $0x18] sm:$0xff]
        %v699 = vsel %vm231, %v694, 0
        %v702 = vsel %vm231, %v695, 0
        %v705 = vsel %vm231, %v696, 0
        %v708 = vsel %vm231, %v697, 0
        %710 = vmatprep.subr.mxu0 0.0
        %711 = vmatpush1.msra.mxu0 %v685
        %712 = vmatprep.subr.mxu0 0.0
        %713 = vmatpush1.msra.mxu0 %v690
        %714 = vmatprep.subr.mxu0 0.0
        %715 = vmatpush1.msra.mxu0 0.0
        %716 = vmatprep.subr.mxu0 0.0
        %717 = vmatpush1.msra.mxu0 0.0
        %718 = vmatprep.subr.mxu0 0.0
        %719 = vmatpush1.msra.mxu0 0.0
        %720 = vmatprep.subr.mxu0 0.0
        %721 = vmatpush1.msra.mxu0 0.0
        %722 = vmatprep.subr.mxu0 0.0
        %723 = vmatpush1.msra.mxu0 0.0
        %724 = vmatprep.subr.mxu0 0.0
        %725 = vmatpush1.msra.mxu0 0.0
        %726 = vmatprep.subr.mxu0 0.0
        %727 = vmatpush1.msra.mxu0 0.0
        %728 = vmatprep.subr.mxu0 0.0
        %729 = vmatpush1.msra.mxu0 0.0
        %730 = vmatprep.subr.mxu0 0.0
        %731 = vmatpush1.msra.mxu0 0.0
        %732 = vmatprep.subr.mxu0 0.0
        %733 = vmatpush1.msra.mxu0 0.0
        %734 = vmatprep.subr.mxu0 0.0
        %735 = vmatpush1.msra.mxu0 0.0
        %736 = vmatprep.subr.mxu0 0.0
        %737 = vmatpush1.msra.mxu0 0.0
        %738 = vmatprep.subr.mxu0 0.0
        %739 = vmatpush1.msra.mxu0 0.0
        %740 = vmatprep.subr.mxu0 0.0
        %741 = vmatpush1.msra.mxu0 0.0
        %742 = vmatprep.subr.mxu0 0.0
        %743 = vmatpush1.msra.mxu0 0.0
        %744 = vmatprep.subr.mxu0 0.0
        %745 = vmatpush1.msra.mxu0 0.0
        %746 = vmatprep.subr.mxu0 0.0
        %747 = vmatpush1.msra.mxu0 0.0
        %748 = vmatprep.subr.mxu0 0.0
        %749 = vmatpush1.msra.mxu0 0.0
        %750 = vmatprep.subr.mxu0 0.0
        %751 = vmatpush1.msra.mxu0 0.0
        %752 = vmatprep.subr.mxu0 0.0
        %753 = vmatpush1.msra.mxu0 0.0
        %754 = vmatprep.subr.mxu0 0.0
        %755 = vmatpush1.msra.mxu0 0.0
        %756 = vmatprep.subr.mxu0 0.0
        %757 = vmatpush1.msra.mxu0 0.0
        %758 = vmatprep.subr.mxu0 0.0
        %759 = vmatpush1.msra.mxu0 0.0
        %760 = vmatprep.subr.mxu0 0.0
        %761 = vmatpush1.msra.mxu0 0.0
        %762 = vmatprep.subr.mxu0 0.0
        %763 = vmatpush1.msra.mxu0 0.0
        %764 = vmatprep.subr.mxu0 0.0
        %765 = vmatpush1.msra.mxu0 0.0
        %766 = vmatprep.subr.mxu0 0.0
        %767 = vmatpush1.msra.mxu0 0.0
        %768 = vmatprep.subr.mxu0 0.0
        %769 = vmatpush1.msra.mxu0 0.0
        %770 = vmatprep.subr.mxu0 0.0
        %771 = vmatpush1.msra.mxu0 0.0
        %772 = vmatprep.subr.mxu0 0.0
        %773 = vmatpush1.msra.mxu0 0.0
        %774 = vmatprep.mubr.f32.mxu0 0.0
        %775 = vmatmul.mubr.f32.gmra.mrb[0].mxu0 %v699
        %v776 = vpop.f32.mrb[0].mxu0
        %v777 = vadd.f32 0.0, %v776
        %v778 = vpop.f32.mrb[0].mxu0
        %779 = vmatprep.mubr.f32.mxu0 0.0
        %780 = vmatmul.mubr.f32.gmra.mrb[0].mxu0 %v702
        %v781 = vpop.f32.mrb[0].mxu0
        %v782 = vadd.f32 0.0, %v781
        %v783 = vpop.f32.mrb[0].mxu0
        %784 = vmatprep.mubr.f32.mxu0 0.0
        %785 = vmatmul.mubr.f32.gmra.mrb[0].mxu0 %v705
        %v786 = vpop.f32.mrb[0].mxu0
        %v787 = vadd.f32 0.0, %v786
        %v788 = vpop.f32.mrb[0].mxu0
        %789 = vmatprep.mubr.f32.mxu0 0.0
        %790 = vmatmul.mubr.f32.gmra.mrb[0].mxu0 %v708
        %v791 = vpop.f32.mrb[0].mxu0
        %v792 = vadd.f32 0.0, %v791
        %v793 = vpop.f32.mrb[0].mxu0
        %794 = vdwg.mxu0
        %v796 = vsel %vm231, %v330, 0
        %v799 = vsel %vm231, %v331, 0
        %v802 = vsel %vm231, %v332, 0
        %v805 = vsel %vm231, %v333, 0
        %807 = vmatprep.subr.mxu0 0.0
        %808 = vmatpush1.msra.mxu0 %v322
        %809 = vmatprep.subr.mxu0 0.0
        %810 = vmatpush1.msra.mxu0 %v327
        %811 = vmatprep.subr.mxu0 0.0
        %812 = vmatpush1.msra.mxu0 0.0
        %813 = vmatprep.subr.mxu0 0.0
        %814 = vmatpush1.msra.mxu0 0.0
        %815 = vmatprep.subr.mxu0 0.0
        %816 = vmatpush1.msra.mxu0 0.0
        %817 = vmatprep.subr.mxu0 0.0
        %818 = vmatpush1.msra.mxu0 0.0
        %819 = vmatprep.subr.mxu0 0.0
        %820 = vmatpush1.msra.mxu0 0.0
        %821 = vmatprep.subr.mxu0 0.0
        %822 = vmatpush1.msra.mxu0 0.0
        %823 = vmatprep.subr.mxu0 0.0
        %824 = vmatpush1.msra.mxu0 0.0
        %825 = vmatprep.subr.mxu0 0.0
        %826 = vmatpush1.msra.mxu0 0.0
        %827 = vmatprep.subr.mxu0 0.0
        %828 = vmatpush1.msra.mxu0 0.0
        %829 = vmatprep.subr.mxu0 0.0
        %830 = vmatpush1.msra.mxu0 0.0
        %831 = vmatprep.subr.mxu0 0.0
        %832 = vmatpush1.msra.mxu0 0.0
        %833 = vmatprep.subr.mxu0 0.0
        %834 = vmatpush1.msra.mxu0 0.0
        %835 = vmatprep.subr.mxu0 0.0
        %836 = vmatpush1.msra.mxu0 0.0
        %837 = vmatprep.subr.mxu0 0.0
        %838 = vmatpush1.msra.mxu0 0.0
        %839 = vmatprep.subr.mxu0 0.0
        %840 = vmatpush1.msra.mxu0 0.0
        %841 = vmatprep.subr.mxu0 0.0
        %842 = vmatpush1.msra.mxu0 0.0
        %843 = vmatprep.subr.mxu0 0.0
        %844 = vmatpush1.msra.mxu0 0.0
        %845 = vmatprep.subr.mxu0 0.0
        %846 = vmatpush1.msra.mxu0 0.0
        %847 = vmatprep.subr.mxu0 0.0
        %848 = vmatpush1.msra.mxu0 0.0
        %849 = vmatprep.subr.mxu0 0.0
        %850 = vmatpush1.msra.mxu0 0.0
        %851 = vmatprep.subr.mxu0 0.0
        %852 = vmatpush1.msra.mxu0 0.0
        %853 = vmatprep.subr.mxu0 0.0
        %854 = vmatpush1.msra.mxu0 0.0
        %855 = vmatprep.subr.mxu0 0.0
        %856 = vmatpush1.msra.mxu0 0.0
        %857 = vmatprep.subr.mxu0 0.0
        %858 = vmatpush1.msra.mxu0 0.0
        %859 = vmatprep.subr.mxu0 0.0
        %860 = vmatpush1.msra.mxu0 0.0
        %861 = vmatprep.subr.mxu0 0.0
        %862 = vmatpush1.msra.mxu0 0.0
        %863 = vmatprep.subr.mxu0 0.0
        %864 = vmatpush1.msra.mxu0 0.0
        %865 = vmatprep.subr.mxu0 0.0
        %866 = vmatpush1.msra.mxu0 0.0
        %867 = vmatprep.subr.mxu0 0.0
        %868 = vmatpush1.msra.mxu0 0.0
        %869 = vmatprep.subr.mxu0 0.0
        %870 = vmatpush1.msra.mxu0 0.0
        %871 = vmatprep.mubr.f32.mxu0 0.0
        %872 = vmatmul.mubr.f32.gmra.mrb[0].mxu0 %v796
        %v873 = vpop.f32.mrb[0].mxu0
        %v874 = vadd.f32 %v502, %v873
        %v875 = vpop.f32.mrb[0].mxu0
        %876 = vmatprep.mubr.f32.mxu0 0.0
        %877 = vmatmul.mubr.f32.gmra.mrb[0].mxu0 %v799
        %v878 = vpop.f32.mrb[0].mxu0
        %v879 = vadd.f32 %v507, %v878
        %v880 = vpop.f32.mrb[0].mxu0
        %881 = vmatprep.mubr.f32.mxu0 0.0
        %882 = vmatmul.mubr.f32.gmra.mrb[0].mxu0 %v802
        %v883 = vpop.f32.mrb[0].mxu0
        %v884 = vadd.f32 %v512, %v883
        %v885 = vpop.f32.mrb[0].mxu0
        %886 = vmatprep.mubr.f32.mxu0 0.0
        %887 = vmatmul.mubr.f32.gmra.mrb[0].mxu0 %v805
        %v888 = vpop.f32.mrb[0].mxu0
        %v889 = vadd.f32 %v517, %v888
        %v890 = vpop.f32.mrb[0].mxu0
        %891 = vdwg.mxu0
        %v893 = vsel %vm231, %v605, 0
        %v896 = vsel %vm231, %v606, 0
        %v899 = vsel %vm231, %v607, 0
        %v902 = vsel %vm231, %v608, 0
        %904 = vmatprep.subr.mxu0 0.0
        %905 = vmatpush1.msra.mxu0 %v596
        %906 = vmatprep.subr.mxu0 0.0
        %907 = vmatpush1.msra.mxu0 %v601
        %908 = vmatprep.subr.mxu0 0.0
        %909 = vmatpush1.msra.mxu0 0.0
        %910 = vmatprep.subr.mxu0 0.0
        %911 = vmatpush1.msra.mxu0 0.0
        %912 = vmatprep.subr.mxu0 0.0
        %913 = vmatpush1.msra.mxu0 0.0
        %914 = vmatprep.subr.mxu0 0.0
        %915 = vmatpush1.msra.mxu0 0.0
        %916 = vmatprep.subr.mxu0 0.0
        %917 = vmatpush1.msra.mxu0 0.0
        %918 = vmatprep.subr.mxu0 0.0
        %919 = vmatpush1.msra.mxu0 0.0
        %920 = vmatprep.subr.mxu0 0.0
        %921 = vmatpush1.msra.mxu0 0.0
        %922 = vmatprep.subr.mxu0 0.0
        %923 = vmatpush1.msra.mxu0 0.0
        %924 = vmatprep.subr.mxu0 0.0
        %925 = vmatpush1.msra.mxu0 0.0
        %926 = vmatprep.subr.mxu0 0.0
        %927 = vmatpush1.msra.mxu0 0.0
        %928 = vmatprep.subr.mxu0 0.0
        %929 = vmatpush1.msra.mxu0 0.0
        %930 = vmatprep.subr.mxu0 0.0
        %931 = vmatpush1.msra.mxu0 0.0
        %932 = vmatprep.subr.mxu0 0.0
        %933 = vmatpush1.msra.mxu0 0.0
        %934 = vmatprep.subr.mxu0 0.0
        %935 = vmatpush1.msra.mxu0 0.0
        %936 = vmatprep.subr.mxu0 0.0
        %937 = vmatpush1.msra.mxu0 0.0
        %938 = vmatprep.subr.mxu0 0.0
        %939 = vmatpush1.msra.mxu0 0.0
        %940 = vmatprep.subr.mxu0 0.0
        %941 = vmatpush1.msra.mxu0 0.0
        %942 = vmatprep.subr.mxu0 0.0
        %943 = vmatpush1.msra.mxu0 0.0
        %944 = vmatprep.subr.mxu0 0.0
        %945 = vmatpush1.msra.mxu0 0.0
        %946 = vmatprep.subr.mxu0 0.0
        %947 = vmatpush1.msra.mxu0 0.0
        %948 = vmatprep.subr.mxu0 0.0
        %949 = vmatpush1.msra.mxu0 0.0
        %950 = vmatprep.subr.mxu0 0.0
        %951 = vmatpush1.msra.mxu0 0.0
        %952 = vmatprep.subr.mxu0 0.0
        %953 = vmatpush1.msra.mxu0 0.0
        %954 = vmatprep.subr.mxu0 0.0
        %955 = vmatpush1.msra.mxu0 0.0
        %956 = vmatprep.subr.mxu0 0.0
        %957 = vmatpush1.msra.mxu0 0.0
        %958 = vmatprep.subr.mxu0 0.0
        %959 = vmatpush1.msra.mxu0 0.0
        %960 = vmatprep.subr.mxu0 0.0
        %961 = vmatpush1.msra.mxu0 0.0
        %962 = vmatprep.subr.mxu0 0.0
        %963 = vmatpush1.msra.mxu0 0.0
        %964 = vmatprep.subr.mxu0 0.0
        %965 = vmatpush1.msra.mxu0 0.0
        %966 = vmatprep.subr.mxu0 0.0
        %967 = vmatpush1.msra.mxu0 0.0
        %968 = vmatprep.mubr.f32.mxu0 0.0
        %969 = vmatmul.mubr.f32.gmra.mrb[0].mxu0 %v893
        %v970 = vpop.f32.mrb[0].mxu0
        %v971 = vadd.f32 %v777, %v970
        %v972 = vpop.f32.mrb[0].mxu0
        %973 = vmatprep.mubr.f32.mxu0 0.0
        %974 = vmatmul.mubr.f32.gmra.mrb[0].mxu0 %v896
        %v975 = vpop.f32.mrb[0].mxu0
        %v976 = vadd.f32 %v782, %v975
        %v977 = vpop.f32.mrb[0].mxu0
        %978 = vmatprep.mubr.f32.mxu0 0.0
        %979 = vmatmul.mubr.f32.gmra.mrb[0].mxu0 %v899
        %v980 = vpop.f32.mrb[0].mxu0
        %v981 = vadd.f32 %v787, %v980
        %v982 = vpop.f32.mrb[0].mxu0
        %983 = vmatprep.mubr.f32.mxu0 0.0
        %984 = vmatmul.mubr.f32.gmra.mrb[0].mxu0 %v902
        %v985 = vpop.f32.mrb[0].mxu0
        %v986 = vadd.f32 %v792, %v985
        %v987 = vpop.f32.mrb[0].mxu0
        %988 = vdwg.mxu0
        %v989 = vadd.f32 %v874, %v971
        %v990 = vadd.f32 %v879, %v976
        %v991 = vadd.f32 %v884, %v981
        %v992 = vadd.f32 %v889, %v986
        %v993 = vld [vmem:[%s2] sm:$0x1]
        %v995 = vlaneseq
        %v996 = vshrl.u32 %v995, 7
        %v997 = vsub.s32 0, %v996
        %v998 = vrot.slane %v993, %v997
        %v1000 = vadd.f32 %v989, %v998
        %v1001 = vadd.f32 %v990, %v998
        %v1002 = vadd.f32 %v991, %v998
        %v1003 = vadd.f32 %v992, %v998
        %1004 = vst.msk [vmem:[%s190] sm:$0xff] %vm234, %v1000
        %1005 = vst.msk [vmem:[%s190 + $0x8] sm:$0xff] %vm234, %v1001
        %1006 = vst.msk [vmem:[%s190 + $0x10] sm:$0xff] %vm234, %v1002
        %1007 = vst.msk [vmem:[%s190 + $0x18] sm:$0xff] %vm234, %v1003
        %1012 = vrot.lane.b32.xlu0 %v1000, 96
        %v1013 = vpop.permute.xlu0 %1012
        %1014 = vrot.lane.b32.xlu0 %v1001, 96
        %v1015 = vpop.permute.xlu0 %1014
        %1016 = vrot.lane.b32.xlu0 %v1002, 96
        %v1017 = vpop.permute.xlu0 %1016
        %1018 = vrot.lane.b32.xlu0 %v1003, 96
        %v1019 = vpop.permute.xlu0 %1018
        %s1024 = scalar_lea.vmem %s190, 32 [#allocation2]
        %1025 = vst.msk [vmem:[%s1024] sm:$0xff] %vm234, %v1013
        %1026 = vst.msk [vmem:[%s1024 + $0x8] sm:$0xff] %vm234, %v1015
        %1027 = vst.msk [vmem:[%s1024 + $0x10] sm:$0xff] %vm234, %v1017
        %1028 = vst.msk [vmem:[%s1024 + $0x18] sm:$0xff] %vm234, %v1019
        %1029 = vrot.lane.b32.xlu0 %v1000, 64
        %v1030 = vpop.permute.xlu0 %1029
        %1031 = vrot.lane.b32.xlu0 %v1001, 64
        %v1032 = vpop.permute.xlu0 %1031
        %1033 = vrot.lane.b32.xlu0 %v1002, 64
        %v1034 = vpop.permute.xlu0 %1033
        %1035 = vrot.lane.b32.xlu0 %v1003, 64
        %v1036 = vpop.permute.xlu0 %1035
        %s1041 = scalar_lea.vmem %s190, 64 [#allocation2]
        %1042 = vst.msk [vmem:[%s1041] sm:$0xff] %vm234, %v1030
        %1043 = vst.msk [vmem:[%s1041 + $0x8] sm:$0xff] %vm234, %v1032
        %1044 = vst.msk [vmem:[%s1041 + $0x10] sm:$0xff] %vm234, %v1034
        %1045 = vst.msk [vmem:[%s1041 + $0x18] sm:$0xff] %vm234, %v1036
        %1046 = vrot.lane.b32.xlu0 %v1000, 32
        %v1047 = vpop.permute.xlu0 %1046
        %1048 = vrot.lane.b32.xlu0 %v1001, 32
        %v1049 = vpop.permute.xlu0 %1048
        %1050 = vrot.lane.b32.xlu0 %v1002, 32
        %v1051 = vpop.permute.xlu0 %1050
        %1052 = vrot.lane.b32.xlu0 %v1003, 32
        %v1053 = vpop.permute.xlu0 %1052
        %s1058 = scalar_lea.vmem %s190, 96 [#allocation2]
        %1059 = vst.msk [vmem:[%s1058] sm:$0xff] %vm234, %v1047
        %1060 = vst.msk [vmem:[%s1058 + $0x8] sm:$0xff] %vm234, %v1049
        %1061 = vst.msk [vmem:[%s1058 + $0x10] sm:$0xff] %vm234, %v1051
        %1062 = vst.msk [vmem:[%s1058 + $0x18] sm:$0xff] %vm234, %v1053
        %s1063 = sand.u32 %s115, 1
        %s1064 = scalar_lea.sflag [#allocation3], %s1063
        %s1065 = sand.u32 %s115, 1
        %s1066 = smul.addr %s1065, 128
        %s1067 = scalar_lea.vmem [#allocation2], %s1066
        // Predicated region
        $region37: #{upsample.1} parent=35 // pred_check
          %p1068 = pneg %p125
        $region38: #{upsample.1} parent=35 // pred_check_branch
          %1070 = sbr.rel (%p1068) target = $region40
        $region39: #{upsample.1} parent=35 // pred_region
          %s1072 = ssub.s32 2048, 2048
          %1073 = vsyncadd %s1064, %s1072
          %s1074 = smul.addr %s18, 16
          %s1075 = smul.addr %s1074, 128
          %s1076 = scalar_lea.hbm %s4, %s1075
          %s1077 = sshll.u32 %s1067, 4
          %s1078 = int_to_ptr.vmem [resolvable:$true] %s1077
          %1083 = dma.vmem_to_hbm [thread:$0]  %s1078, 2048, %s1076, %s1064, 128, 128, 8
        $region40: #{upsample.1} parent=35 // pred_fallthru
          _
      $region36: #{upsample.1} parent=5 // pred_fallthru
        _
      %p1084 = scmp.le.s32.totalorder 2, %s13
      // Predicated region
      $region41: #{upsample.1} parent=5 // pred_check
        %p1085 = pneg %p1084
      $region42: #{upsample.1} parent=5 // pred_check_branch
        %1087 = sbr.rel (%p1085) target = $region44
      $region43: #{upsample.1} parent=5 // pred_region
        %s1088 = ssub.s32 %s13, 2
        // Predicated region
        $region45: #{upsample.1} parent=43 // pred_check
          %p1089 = pneg %p131
        $region46: #{upsample.1} parent=43 // pred_check_branch
          %1091 = sbr.rel (%p1089) target = $region48
        $region47: #{upsample.1} parent=43 // pred_region
          %s1092 = sand.u32 %s116, 1
          %s1093 = scalar_lea.sflag [#allocation3], %s1092
          %s1094 = sand.u32 %s116, 1
          %s1095 = smul.addr %s1094, 128
          %s1096 = scalar_lea.vmem [#allocation2], %s1095
          %1097 = dma.done %s1093, 2048
        $region48: #{upsample.1} parent=43 // pred_fallthru
          _
      $region44: #{upsample.1} parent=5 // pred_fallthru
        _
    $region6: #{upsample.1} parent=1 // loop_footer
      %s17 = sadd.s32 1, %s13
    $region7: #{upsample.1} parent=1 // loop_footer_branch
      %12 = sbr.rel target = $region3
    $region8: #{upsample.1} parent=1 // loop_exit
      _
    %1098 = vsyncpa [#allocation3], 1
    %s1099 = scalar_lea.sflag [#allocation3], 1
    %1100 = vsyncpa %s1099, 1

</llo_original>
